<compile_context>
chip_gen: v7x
topology: tpu7x:2x2x1
jax: 0.10.0
libtpu: 0.0.40
codegen_flags: <defaults>
</compile_context>

<pallas_src>
import functools

import jax
import jax.numpy as jnp
from jax.experimental import pallas as pl
from jax.experimental.pallas import tpu as pltpu


def attention_kernel(x_ref, w1_ref, b1_ref, w2_ref, b2_ref, o_ref,
                     *, use_bf16_mxu, approx_recip):
    TB, S, D = x_ref.shape
    x = x_ref[...]                                   # (TB, S, D) f32
    x2 = x.reshape(TB * S, D)                        # merge leading dims for one big matmul

    lhs = x2.astype(jnp.bfloat16) if use_bf16_mxu else x2
    # h = tanh(x @ W1^T + b1); MXU matmul, f32 accumulation, f32 elementwise.
    h = jnp.tanh(
        jnp.dot(lhs, w1_ref[...], preferred_element_type=jnp.float32)
        + b1_ref[...]                                # (1, D) broadcasts over TB*S rows
    )                                                # (TB*S, D) f32

    h3 = h.reshape(TB, S, D)
    # scores = h @ W2^T + b2 done as VPU multiply + lane (XLU) reduce
    # (avoids an N=1 MXU matmul that would waste a full MXU pass).
    s = jnp.sum(h3 * w2_ref[...], axis=-1, keepdims=True) + b2_ref[0]   # (TB, S, 1)

    # softmax over the sequence axis (dim=1 in the PyTorch module), in f32.
    m = jnp.max(s, axis=1, keepdims=True)            # (TB, 1, 1)
    e = jnp.exp(s - m)
    denom = jnp.sum(e, axis=1, keepdims=True)        # (TB, 1, 1)
    attn = e * pl.reciprocal(denom, approx=approx_recip)   # (TB, S, 1)

    # weighted sum over the sequence: sum_s attn[b,s] * x[b,s,:] -> (TB, D)
    # (S is small here; the XLU sublane reduce is fine. For S >= 128 use an MXU
    #  contraction einsum('bs,bsd->bd') instead.)
    pooled = jnp.sum(x * attn, axis=1)               # (TB, D) f32

    o_ref[0] = pooled.astype(o_ref.dtype)


def attention_forward(x, w1, b1, w2, b2, *, block_b=None,
                      use_bf16_mxu=False, approx_recip=False):
    """x: (B, S, D); w1: (D, D) torch layout (out, in); b1: (D,); w2: (1, D); b2: (1,)."""
    B, S, D = x.shape

    if block_b is None:
        # Aim for ~256 MXU rows (TB*S) per step, but keep >= 2 grid blocks when B allows
        # so both v7x TensorCores are fed.
        block_b = max(1, 256 // max(S, 1))
        block_b = min(block_b, B)
        if B >= 2:
            block_b = min(block_b, -(-B // 2))
    TB = int(block_b)

    nb = -(-B // TB)                                 # ceil(B / TB)
    Bp = nb * TB
    if Bp != B:
        # Zero-pad batch; padded rows give uniform softmax over zeros -> zero output,
        # sliced off below.
        x = jnp.pad(x, ((0, Bp - B), (0, 0), (0, 0)))

    mxu_dtype = jnp.bfloat16 if use_bf16_mxu else x.dtype
    w1t = w1.T.astype(mxu_dtype)                     # (D, D): kernel does x @ W1^T
    b1r = b1.reshape(1, D).astype(jnp.float32)       # (1, D)
    w2r = w2.reshape(1, 1, D).astype(jnp.float32)    # (1, 1, D) row for the VPU reduce
    b2r = b2.reshape(1).astype(jnp.float32)          # (1,) scalar in SMEM

    kernel = functools.partial(
        attention_kernel, use_bf16_mxu=use_bf16_mxu, approx_recip=approx_recip)

    flops = 2 * Bp * S * D * D + 4 * Bp * S * D      # matmul + scores + pooling
    transcendentals = Bp * S * D + Bp * S            # tanh + exp
    bytes_accessed = (x.size * x.dtype.itemsize
                      + w1t.size * w1t.dtype.itemsize
                      + Bp * D * x.dtype.itemsize)

    grid_spec = pltpu.PrefetchScalarGridSpec(
        num_scalar_prefetch=0,
        grid=(nb,),
        in_specs=[
            pl.BlockSpec((TB, S, D), lambda g: (g, 0, 0)),   # TB batch rows per step
            pl.BlockSpec((D, D), lambda g: (0, 0)),          # W1^T (full, resident)
            pl.BlockSpec((1, D), lambda g: (0, 0)),          # b1
            pl.BlockSpec((1, 1, D), lambda g: (0, 0, 0)),    # w2 row
            pl.BlockSpec(memory_space=pltpu.MemorySpace.SMEM),  # b2 scalar in SMEM
        ],
        out_specs=pl.BlockSpec((1, TB, D), lambda g: (g, 0, 0)),
    )

    out = pl.pallas_call(
        kernel,
        out_shape=jax.ShapeDtypeStruct((nb, TB, D), x.dtype),
        grid_spec=grid_spec,
        compiler_params=pltpu.CompilerParams(
            dimension_semantics=("parallel",)),
        cost_estimate=pl.CostEstimate(
            flops=flops,
            transcendentals=transcendentals,
            bytes_accessed=bytes_accessed),
    )(x, w1t, b1r, w2r, b2r)

    return out.reshape(Bp, D)[:B]


def reference_forward(x, w1, b1, w2, b2):
    # Pure-JAX reference mirroring the PyTorch forward.
    h = jnp.tanh(jnp.einsum("bsd,ed->bse", x, w1) + b1)          # (B, S, D)
    s = jnp.einsum("bsd,od->bso", h, w2) + b2                    # (B, S, 1)
    attn = jax.nn.softmax(s, axis=1)                             # softmax over seq
    return jnp.sum(x * attn, axis=1)                             # (B, D)


if __name__ == "__main__":
    B, S, D = 8, 8, 32
    key = jax.random.PRNGKey(0)
    kx, k1, k2, k3, k4 = jax.random.split(key, 5)

    x = jax.random.normal(kx, (B, S, D), dtype=jnp.float32)

    # Deterministic parameter init (torch nn.Linear-style uniform bounds).
    bound = 1.0 / (D ** 0.5)
    w1 = jax.random.uniform(k1, (D, D), minval=-bound, maxval=bound, dtype=jnp.float32)
    b1 = jax.random.uniform(k2, (D,), minval=-bound, maxval=bound, dtype=jnp.float32)
    w2 = jax.random.uniform(k3, (1, D), minval=-bound, maxval=bound, dtype=jnp.float32)
    b2 = jax.random.uniform(k4, (1,), minval=-bound, maxval=bound, dtype=jnp.float32)

    ref = reference_forward(x, w1, b1, w2, b2)

    # Exact path (f32 MXU operands, exact reciprocal) — strict check.
    out = jax.block_until_ready(attention_forward(x, w1, b1, w2, b2))
    assert out.shape == (B, D)
    assert jnp.allclose(out, ref, atol=2e-5, rtol=2e-5), "f32 path mismatch vs reference"

    # Fast path (bf16 MXU operands + approx reciprocal, v6e/v7x-oriented) — loose check.
    out_fast = jax.block_until_ready(
        attention_forward(x, w1, b1, w2, b2, use_bf16_mxu=True, approx_recip=True))
    assert out_fast.shape == (B, D)
    assert jnp.allclose(out_fast, ref, atol=5e-2, rtol=5e-2), "bf16 path mismatch vs reference"

    print("KERNEL_OK")
</pallas_src>

<mosaic_0001>
module attributes {stable_mosaic.version = 11 : i64} {
  func.func @attention_kernel(%arg0: i32, %arg1: memref<4x8x32xf32, #tpu.memory_space<vmem>>, %arg2: memref<32x32xf32, #tpu.memory_space<vmem>>, %arg3: memref<1x32xf32, #tpu.memory_space<vmem>>, %arg4: memref<1x1x32xf32, #tpu.memory_space<vmem>>, %arg5: memref<1xf32, #tpu.memory_space<smem>>, %arg6: memref<1x4x32xf32, #tpu.memory_space<vmem>>) attributes {dimension_semantics = [#tpu.dimension_semantics<parallel>], iteration_bounds = array<i64: 2>, scalar_prefetch = 0 : i64, scratch_operands = 0 : i64, tpu.core_type = #tpu.core_type<tc>, window_params = [{transform_indices = @transform_0, window_bounds = array<i64: 4, 8, 32>}, {pipeline_mode = #tpu.pipeline_mode<synchronous>, transform_indices = @transform_1, window_bounds = array<i64: 32, 32>}, {pipeline_mode = #tpu.pipeline_mode<synchronous>, transform_indices = @transform_2, window_bounds = array<i64: 1, 32>}, {pipeline_mode = #tpu.pipeline_mode<synchronous>, transform_indices = @transform_3, window_bounds = array<i64: 1, 1, 32>}, {transform_indices = @transform_4, window_bounds = array<i64: 1>}, {transform_indices = @transform_5, window_bounds = array<i64: 1, 4, 32>}]} {
    %c0 = arith.constant 0 : index
    %c0_0 = arith.constant 0 : index
    %c0_1 = arith.constant 0 : index
    %0 = vector.load %arg1[%c0, %c0_0, %c0_1] : memref<4x8x32xf32, #tpu.memory_space<vmem>>, vector<4x8x32xf32>
    %1 = vector.shape_cast %0 : vector<4x8x32xf32> to vector<32x32xf32>
    %c0_2 = arith.constant 0 : index
    %c0_3 = arith.constant 0 : index
    %2 = vector.load %arg2[%c0_2, %c0_3] : memref<32x32xf32, #tpu.memory_space<vmem>>, vector<32x32xf32>
    %cst = arith.constant dense<0.000000e+00> : vector<32x32xf32>
    %3 = tpu.matmul %1, %2, %cst {dimension_numbers = #tpu.dot_dimension_numbers<[1], [0], [0], [1], [0, 0, 1, 1], [], []>} : vector<32x32xf32>, vector<32x32xf32>, vector<32x32xf32> -> vector<32x32xf32>
    %c0_4 = arith.constant 0 : index
    %c0_5 = arith.constant 0 : index
    %4 = vector.load %arg3[%c0_4, %c0_5] : memref<1x32xf32, #tpu.memory_space<vmem>>, vector<1x32xf32>
    %5 = vector.broadcast %4 : vector<1x32xf32> to vector<32x32xf32>
    %6 = arith.addf %3, %5 : vector<32x32xf32>
    %7 = math.tanh %6 : vector<32x32xf32>
    %8 = vector.shape_cast %7 : vector<32x32xf32> to vector<4x8x32xf32>
    %c0_6 = arith.constant 0 : index
    %c0_7 = arith.constant 0 : index
    %c0_8 = arith.constant 0 : index
    %9 = vector.load %arg4[%c0_6, %c0_7, %c0_8] : memref<1x1x32xf32, #tpu.memory_space<vmem>>, vector<1x1x32xf32>
    %10 = vector.broadcast %9 : vector<1x1x32xf32> to vector<4x8x32xf32>
    %11 = arith.mulf %8, %10 : vector<4x8x32xf32>
    %cst_9 = arith.constant dense<0.000000e+00> : vector<4x8xf32>
    %12 = vector.multi_reduction <add>, %11, %cst_9 [2] : vector<4x8x32xf32> to vector<4x8xf32>
    %13 = vector.shape_cast %12 : vector<4x8xf32> to vector<4x8x1xf32>
    %c0_10 = arith.constant 0 : index
    %14 = memref.load %arg5[%c0_10] : memref<1xf32, #tpu.memory_space<smem>>
    %15 = vector.broadcast %14 : f32 to vector<4x8x1xf32>
    %16 = arith.addf %13, %15 : vector<4x8x1xf32>
    %cst_11 = arith.constant dense<0xFF800000> : vector<4x1xf32>
    %17 = vector.multi_reduction <maximumf>, %16, %cst_11 [1] : vector<4x8x1xf32> to vector<4x1xf32>
    %18 = vector.shape_cast %17 : vector<4x1xf32> to vector<4x1x1xf32>
    %19 = vector.broadcast %18 : vector<4x1x1xf32> to vector<4x8x1xf32>
    %20 = arith.subf %16, %19 : vector<4x8x1xf32>
    %21 = math.exp %20 : vector<4x8x1xf32>
    %cst_12 = arith.constant dense<0.000000e+00> : vector<4x1xf32>
    %22 = vector.multi_reduction <add>, %21, %cst_12 [1] : vector<4x8x1xf32> to vector<4x1xf32>
    %23 = vector.shape_cast %22 : vector<4x1xf32> to vector<4x1x1xf32>
    %24 = tpu.reciprocal %23 : vector<4x1x1xf32> -> vector<4x1x1xf32>
    %25 = vector.broadcast %24 : vector<4x1x1xf32> to vector<4x8x1xf32>
    %26 = arith.mulf %21, %25 : vector<4x8x1xf32>
    %27 = vector.broadcast %26 : vector<4x8x1xf32> to vector<4x8x32xf32>
    %28 = arith.mulf %0, %27 : vector<4x8x32xf32>
    %cst_13 = arith.constant dense<0.000000e+00> : vector<4x32xf32>
    %29 = vector.multi_reduction <add>, %28, %cst_13 [1] : vector<4x8x32xf32> to vector<4x32xf32>
    %c0_14 = arith.constant 0 : index
    %c0_15 = arith.constant 0 : index
    %c0_16 = arith.constant 0 : index
    %30 = vector.load %arg6[%c0_14, %c0_15, %c0_16] : memref<1x4x32xf32, #tpu.memory_space<vmem>>, vector<1x4x32xf32>
    %31 = vector.shape_cast %30 : vector<1x4x32xf32> to vector<4x32xf32>
    %32 = vector.shape_cast %29 : vector<4x32xf32> to vector<1x4x32xf32>
    tpu.vector_store %arg6[%c0_14, %c0_15, %c0_16], %32 {strides = array<i32>} : memref<1x4x32xf32, #tpu.memory_space<vmem>>, vector<1x4x32xf32>,
    return
  }
  func.func @transform_0(%arg0: i32) -> (i32, i32, i32) {
    %c0_i32 = arith.constant 0 : i32
    %c0_i32_0 = arith.constant 0 : i32
    %c0_i32_1 = arith.constant 0 : i32
    return %arg0, %c0_i32, %c0_i32_0 : i32, i32, i32
  }
  func.func @transform_1(%arg0: i32) -> (i32, i32) {
    %c0_i32 = arith.constant 0 : i32
    %c0_i32_0 = arith.constant 0 : i32
    %c0_i32_1 = arith.constant 0 : i32
    return %c0_i32, %c0_i32_0 : i32, i32
  }
  func.func @transform_2(%arg0: i32) -> (i32, i32) {
    %c0_i32 = arith.constant 0 : i32
    %c0_i32_0 = arith.constant 0 : i32
    %c0_i32_1 = arith.constant 0 : i32
    return %c0_i32, %c0_i32_0 : i32, i32
  }
  func.func @transform_3(%arg0: i32) -> (i32, i32, i32) {
    %c0_i32 = arith.constant 0 : i32
    %c0_i32_0 = arith.constant 0 : i32
    %c0_i32_1 = arith.constant 0 : i32
    %c0_i32_2 = arith.constant 0 : i32
    return %c0_i32, %c0_i32_0, %c0_i32_1 : i32, i32, i32
  }
  func.func @transform_4(%arg0: i32) -> i32 {
    %c0_i32 = arith.constant 0 : i32
    %c0_i32_0 = arith.constant 0 : i32
    return %c0_i32 : i32
  }
  func.func @transform_5(%arg0: i32) -> (i32, i32, i32) {
    %c0_i32 = arith.constant 0 : i32
    %c0_i32_0 = arith.constant 0 : i32
    %c0_i32_1 = arith.constant 0 : i32
    return %arg0, %c0_i32, %c0_i32_0 : i32, i32, i32
  }
}

</mosaic_0001>

<llo_original>
// kernel: tpu_custom_call.1
$region0: #{tpu_custom_call.1}
  #allocation0 [shape = 'u32[]', space=smem, size = 0x4, offset = 0x4, fixed_abs, tag = 'smem constant byte address 0x4 - core index']
  #allocation1 [shape = 'u32[144,128]{1,0:T(1,128)}', space=vmem, size = 0x12000, scoped, tag = 'internal scratch']
  #allocation2 [shape = 'f32[1]{0:T(128)S(6)}', space=smem, size = 0x200, scoped, tag = 'scoped memory for tpu_custom_call.1']
  %s0 = inlined_call_operand.hbm [shape: f32[8,8,32], index: 0, kind: input, shape index: {}]
  %s1 = inlined_call_operand.hbm [shape: f32[32,32], index: 1, kind: input, shape index: {}]
  %s2 = inlined_call_operand.vmem [shape: f32[1,32], index: 2, kind: input, shape index: {}]
  %s3 = inlined_call_operand.vmem [shape: f32[1,1,32], index: 3, kind: input, shape index: {}]
  %s4 = inlined_call_operand.<no memory space> [shape: f32[1], index: 4, kind: input, shape index: {}]
  %s5 = inlined_call_operand.hbm [shape: f32[2,4,32], index: 5, kind: output, shape index: {}]
  %s6 = sld [smem:[#allocation0]]
  $region61: #{tpu_custom_call.1} parent=0
    _
  %s8 = ssub.s32 1, %s6
  %s9 = scalar_select 0, %s8, %s6
  %10 = sst [smem:[#allocation2]] %s4
  $region1: #{tpu_custom_call.1} parent=0
    #allocation3 [shape = 'u8[32768]{0}', space=vmem, size = 0x8000, scoped, tag = 'input window, operand 0']
    #allocation4 [shape = 's32[2]{0}', space=sflag, size = 0x8, scoped, tag = 'scoped memory for tpu_custom_call.1']
    #allocation5 [shape = 's32[2]{0}', space=sflag, size = 0x8, scoped, tag = 'scoped memory for tpu_custom_call.1']
    #allocation6 [shape = 'u8[16384]{0}', space=vmem, size = 0x4000, scoped, tag = 'input window, operand 1, single buffered']
    #allocation7 [shape = 's32[1]{0}', space=sflag, size = 0x4, scoped, tag = 'scoped memory for tpu_custom_call.1']
    #allocation8 [shape = 'u8[4096]{0}', space=vmem, size = 0x1000, scoped, tag = 'output window, operand 0']
    %11 = vsyncpa [#allocation4], 0
    %s12 = scalar_lea.sflag [#allocation4], 1
    %13 = vsyncpa %s12, 0
    %14 = vsyncpa [#allocation7], 0
    %15 = vsyncpa [#allocation5], 0
    %s16 = scalar_lea.sflag [#allocation5], 1
    %17 = vsyncpa %s16, 0
    loop: start=0, step=1, limit=4
    $region2: #{tpu_custom_call.1} parent=1 // loop_pre_header
      _
    $region3: #{tpu_custom_call.1} parent=1 // loop_header
      %s19 = sphi 0, %s23
      %p20 = scmp.ge.s32.totalorder %s19, 4
      %s29 = sphi 0, %s31
      %s32 = sphi 0, %s29
      %s33 = sphi 0, %s32
      %s49 = sphi 0, %s33
      %s53 = sphi 0, %s53
      %s55 = sphi 0, %s53
      %s56 = sphi 0, %s55
      %s70 = sphi 0, %s56
      %s74 = sphi 0, %s74
      %s76 = sphi 0, %s74
      %s77 = sphi 0, %s76
      %s91 = sphi 0, %s77
      %s95 = sphi 0, %s95
      %s97 = sphi 0, %s95
      %s98 = sphi 0, %s97
      %s112 = sphi 0, %s98
      %s116 = sphi 0, %s116
      %s118 = sphi 0, %s116
      %s119 = sphi 0, %s118
      %s133 = sphi 0, %s119
      %s139 = sphi 0, %s141
      %s142 = sphi 0, %s139
      %s143 = sphi 0, %s142
      %s159 = sphi 0, %s143
    $region4: #{tpu_custom_call.1} parent=1 // loop_header_branch
      %22 = sbr.rel (%p20) target = $region8
    $region5: #{tpu_custom_call.1} parent=1 // loop_body
      %s24 = ssub.s32 %s19, 1
      %s25 = ssub.s32 %s19, 2
      %s26 = sadd.s32 %s19, 1
      %s27 = ssub.s32 %s19, %s26
      %p28 = scmp.eq.s32.totalorder %s27, 0
      %s30 = sadd.s32 %s29, 1
      %s31 = scalar_select %p28, %s29, %s30
      %p34 = pneg %p28
      %p35 = scmp.eq.s32.totalorder %s19, 1
      %p36 = por %p34, %p35
      %p37 = scmp.ne.s32.totalorder %s29, %s32
      %p38 = scmp.eq.s32.totalorder %s19, 0
      %p39 = por %p37, %p38
      %p40 = scmp.ne.s32.totalorder %s29, %s32
      %p41 = scmp.eq.s32.totalorder %s24, 1
      %p42 = por %p40, %p41
      %p43 = scmp.ne.s32.totalorder %s32, %s33
      %p44 = scmp.eq.s32.totalorder %s24, 0
      %p45 = por %p43, %p44
      %p46 = scmp.ne.s32.totalorder %s32, %s33
      %p47 = scmp.eq.s32.totalorder %s25, 1
      %p48 = por %p46, %p47
      %p50 = scmp.ne.s32.totalorder %s33, %s49
      %p51 = scmp.eq.s32.totalorder %s25, 0
      %p52 = por %p50, %p51
      %s54 = sadd.s32 %s53, 1
      %p57 = scmp.eq.s32.totalorder %s19, 1
      %p58 = scmp.ne.s32.totalorder %s53, %s55
      %p59 = scmp.eq.s32.totalorder %s19, 0
      %p60 = por %p58, %p59
      %p61 = scmp.ne.s32.totalorder %s53, %s55
      %p62 = scmp.eq.s32.totalorder %s24, 1
      %p63 = por %p61, %p62
      %p64 = scmp.ne.s32.totalorder %s55, %s56
      %p65 = scmp.eq.s32.totalorder %s24, 0
      %p66 = por %p64, %p65
      %p67 = scmp.ne.s32.totalorder %s55, %s56
      %p68 = scmp.eq.s32.totalorder %s25, 1
      %p69 = por %p67, %p68
      %p71 = scmp.ne.s32.totalorder %s56, %s70
      %p72 = scmp.eq.s32.totalorder %s25, 0
      %p73 = por %p71, %p72
      %s75 = sadd.s32 %s74, 1
      %p78 = scmp.eq.s32.totalorder %s19, 1
      %p79 = scmp.ne.s32.totalorder %s74, %s76
      %p80 = scmp.eq.s32.totalorder %s19, 0
      %p81 = por %p79, %p80
      %p82 = scmp.ne.s32.totalorder %s74, %s76
      %p83 = scmp.eq.s32.totalorder %s24, 1
      %p84 = por %p82, %p83
      %p85 = scmp.ne.s32.totalorder %s76, %s77
      %p86 = scmp.eq.s32.totalorder %s24, 0
      %p87 = por %p85, %p86
      %p88 = scmp.ne.s32.totalorder %s76, %s77
      %p89 = scmp.eq.s32.totalorder %s25, 1
      %p90 = por %p88, %p89
      %p92 = scmp.ne.s32.totalorder %s77, %s91
      %p93 = scmp.eq.s32.totalorder %s25, 0
      %p94 = por %p92, %p93
      %s96 = sadd.s32 %s95, 1
      %p99 = scmp.eq.s32.totalorder %s19, 1
      %p100 = scmp.ne.s32.totalorder %s95, %s97
      %p101 = scmp.eq.s32.totalorder %s19, 0
      %p102 = por %p100, %p101
      %p103 = scmp.ne.s32.totalorder %s95, %s97
      %p104 = scmp.eq.s32.totalorder %s24, 1
      %p105 = por %p103, %p104
      %p106 = scmp.ne.s32.totalorder %s97, %s98
      %p107 = scmp.eq.s32.totalorder %s24, 0
      %p108 = por %p106, %p107
      %p109 = scmp.ne.s32.totalorder %s97, %s98
      %p110 = scmp.eq.s32.totalorder %s25, 1
      %p111 = por %p109, %p110
      %p113 = scmp.ne.s32.totalorder %s98, %s112
      %p114 = scmp.eq.s32.totalorder %s25, 0
      %p115 = por %p113, %p114
      %s117 = sadd.s32 %s116, 1
      %p120 = scmp.eq.s32.totalorder %s19, 1
      %p121 = scmp.ne.s32.totalorder %s116, %s118
      %p122 = scmp.eq.s32.totalorder %s19, 0
      %p123 = por %p121, %p122
      %p124 = scmp.ne.s32.totalorder %s116, %s118
      %p125 = scmp.eq.s32.totalorder %s24, 1
      %p126 = por %p124, %p125
      %p127 = scmp.ne.s32.totalorder %s118, %s119
      %p128 = scmp.eq.s32.totalorder %s24, 0
      %p129 = por %p127, %p128
      %p130 = scmp.ne.s32.totalorder %s118, %s119
      %p131 = scmp.eq.s32.totalorder %s25, 1
      %p132 = por %p130, %p131
      %p134 = scmp.ne.s32.totalorder %s119, %s133
      %p135 = scmp.eq.s32.totalorder %s25, 0
      %p136 = por %p134, %p135
      %s137 = ssub.s32 %s19, %s26
      %p138 = scmp.eq.s32.totalorder %s137, 0
      %s140 = sadd.s32 %s139, 1
      %s141 = scalar_select %p138, %s139, %s140
      %p144 = pneg %p138
      %p145 = scmp.eq.s32.totalorder %s19, 1
      %p146 = por %p144, %p145
      %p147 = scmp.ne.s32.totalorder %s139, %s142
      %p148 = scmp.eq.s32.totalorder %s19, 0
      %p149 = por %p147, %p148
      %p150 = scmp.ne.s32.totalorder %s139, %s142
      %p151 = scmp.eq.s32.totalorder %s24, 1
      %p152 = por %p150, %p151
      %p153 = scmp.ne.s32.totalorder %s142, %s143
      %p154 = scmp.eq.s32.totalorder %s24, 0
      %p155 = por %p153, %p154
      %p156 = scmp.ne.s32.totalorder %s142, %s143
      %p157 = scmp.eq.s32.totalorder %s25, 1
      %p158 = por %p156, %p157
      %p160 = scmp.ne.s32.totalorder %s143, %s159
      %p161 = scmp.eq.s32.totalorder %s25, 0
      %p162 = por %p160, %p161
      %p163 = scmp.le.s32.totalorder 1, %s19
      %p164 = scmp.lt.s32.totalorder %s19, 3
      %p165 = pnand %p163, %p164
      %p166 = pneg %p165
      // Predicated region
      $region9: #{tpu_custom_call.1} parent=5 // pred_check
        _
      $region10: #{tpu_custom_call.1} parent=5 // pred_check_branch
        %168 = sbr.rel (%p165) target = $region12
      $region11: #{tpu_custom_call.1} parent=5 // pred_region
        %s169 = ssub.s32 %s19, 1
        // Predicated region
        $region13: #{tpu_custom_call.1} parent=11 // pred_check
          %p170 = pneg %p66
        $region14: #{tpu_custom_call.1} parent=11 // pred_check_branch
          %172 = sbr.rel (%p170) target = $region16
        $region15: #{tpu_custom_call.1} parent=11 // pred_region
          %s174 = ssub.s32 512, 512
          %175 = vsyncadd [#allocation7], %s174
          %s176 = sshll.u32 [#allocation6], 4
          %s177 = int_to_ptr.vmem [resolvable:$true] %s176
          %182 = dma.hbm_to_vmem [thread:$0]  %s1, 512, %s177, [#allocation7], 128, 128, 8
        $region16: #{tpu_custom_call.1} parent=11 // pred_fallthru
          _
        // Predicated region
        $region17: #{tpu_custom_call.1} parent=11 // pred_check
          %p183 = pneg %p87
        $region18: #{tpu_custom_call.1} parent=11 // pred_check_branch
          %185 = sbr.rel (%p183) target = $region20
        $region19: #{tpu_custom_call.1} parent=11 // pred_region
          _
        $region20: #{tpu_custom_call.1} parent=11 // pred_fallthru
          _
        // Predicated region
        $region21: #{tpu_custom_call.1} parent=11 // pred_check
          %p186 = pneg %p108
        $region22: #{tpu_custom_call.1} parent=11 // pred_check_branch
          %188 = sbr.rel (%p186) target = $region24
        $region23: #{tpu_custom_call.1} parent=11 // pred_region
          _
        $region24: #{tpu_custom_call.1} parent=11 // pred_fallthru
          _
        // Predicated region
        $region25: #{tpu_custom_call.1} parent=11 // pred_check
          %p189 = pneg %p129
        $region26: #{tpu_custom_call.1} parent=11 // pred_check_branch
          %191 = sbr.rel (%p189) target = $region28
        $region27: #{tpu_custom_call.1} parent=11 // pred_region
          _
        $region28: #{tpu_custom_call.1} parent=11 // pred_fallthru
          _
      $region12: #{tpu_custom_call.1} parent=5 // pred_fallthru
        _
      %p192 = scmp.lt.s32.totalorder %s19, 2
      // Predicated region
      $region29: #{tpu_custom_call.1} parent=5 // pred_check
        %p193 = pneg %p192
      $region30: #{tpu_custom_call.1} parent=5 // pred_check_branch
        %195 = sbr.rel (%p193) target = $region32
      $region31: #{tpu_custom_call.1} parent=5 // pred_region
        // Predicated region
        $region33: #{tpu_custom_call.1} parent=31 // pred_check
          %p196 = pneg %p39
        $region34: #{tpu_custom_call.1} parent=31 // pred_check_branch
          %198 = sbr.rel (%p196) target = $region36
        $region35: #{tpu_custom_call.1} parent=31 // pred_region
          %s199 = sand.u32 %s29, 1
          %s200 = scalar_lea.sflag [#allocation4], %s199
          %s201 = sand.u32 %s29, 1
          %s202 = smul.addr %s201, 32
          %s203 = scalar_lea.vmem [#allocation3], %s202
          %s204 = smul.u32 4, %s19
          %s206 = ssub.s32 512, 512
          %207 = vsyncadd %s200, %s206
          %s208 = smul.addr %s204, 128
          %s209 = scalar_lea.hbm %s0, %s208
          %s210 = sshll.u32 %s203, 4
          %s211 = int_to_ptr.vmem [resolvable:$true] %s210
          %216 = dma.hbm_to_vmem [thread:$0]  %s209, 512, %s211, %s200, 128, 128, 8
        $region36: #{tpu_custom_call.1} parent=31 // pred_fallthru
          _
      $region32: #{tpu_custom_call.1} parent=5 // pred_fallthru
        _
      %p217 = scmp.le.s32.totalorder 1, %s19
      %p218 = scmp.lt.s32.totalorder %s19, 3
      %p219 = pnand %p217, %p218
      %p220 = pneg %p219
      // Predicated region
      $region37: #{tpu_custom_call.1} parent=5 // pred_check
        _
      $region38: #{tpu_custom_call.1} parent=5 // pred_check_branch
        %222 = sbr.rel (%p219) target = $region40
      $region39: #{tpu_custom_call.1} parent=5 // pred_region
        %s223 = ssub.s32 %s19, 1
        %s224 = sand.u32 %s32, 1
        %s225 = scalar_lea.sflag [#allocation4], %s224
        %s226 = sand.u32 %s32, 1
        %s227 = smul.addr %s226, 32
        %s228 = scalar_lea.vmem [#allocation3], %s227
        // Predicated region
        $region41: #{tpu_custom_call.1} parent=39 // pred_check
          %p229 = pneg %p45
        $region42: #{tpu_custom_call.1} parent=39 // pred_check_branch
          %231 = sbr.rel (%p229) target = $region44
        $region43: #{tpu_custom_call.1} parent=39 // pred_region
          %232 = dma.done %s225, 512
        $region44: #{tpu_custom_call.1} parent=39 // pred_fallthru
          _
        // Predicated region
        $region45: #{tpu_custom_call.1} parent=39 // pred_check
          %p233 = pneg %p66
        $region46: #{tpu_custom_call.1} parent=39 // pred_check_branch
          %235 = sbr.rel (%p233) target = $region48
        $region47: #{tpu_custom_call.1} parent=39 // pred_region
          %236 = dma.done [#allocation7], 512
        $region48: #{tpu_custom_call.1} parent=39 // pred_fallthru
          _
        %s237 = sand.u32 %s32, 1
        %s238 = scalar_lea.sflag [#allocation4], %s237
        %s239 = sand.u32 %s32, 1
        %s240 = smul.addr %s239, 32
        %s241 = scalar_lea.vmem [#allocation3], %s240
        %p242 = pneg %p45
        %p243 = pneg %p42
        %p244 = pneg %p66
        %p245 = pneg %p63
        %p246 = pneg %p87
        %p247 = pneg %p84
        %p248 = pneg %p108
        %p249 = pneg %p105
        %p250 = pneg %p129
        %p251 = pneg %p126
        %p252 = pneg %p155
        %p253 = pneg %p152
        %s254 = sand.u32 %s142, 1
        %s255 = scalar_lea.sflag [#allocation5], %s254
        %s256 = sand.u32 %s142, 1
        %s257 = smul.addr %s256, 4
        %s258 = scalar_lea.vmem [#allocation8], %s257
        %s259 = smul.u32 4, %s24
        %v260 = vld [vmem:[%s228] sm:$0xff]
        %v261 = vld [vmem:[%s228 + $0x8] sm:$0xff]
        %v262 = vld [vmem:[%s228 + $0x10] sm:$0xff]
        %v263 = vld [vmem:[%s228 + $0x18] sm:$0xff]
        %v264 = vld [vmem:[#allocation6] sm:$0xff]
        %v265 = vld [vmem:[#allocation6 + $0x8] sm:$0xff]
        %v266 = vld [vmem:[#allocation6 + $0x10] sm:$0xff]
        %v267 = vld [vmem:[#allocation6 + $0x18] sm:$0xff]
        %v268 = vld [vmem:[%s2] sm:$0x1]
        %v270 = vlaneseq
        %v271 = vshrl.u32 %v270, 7
        %v272 = vsub.s32 0, %v271
        %v273 = vrot.slane %v268, %v272
        %vm275 = vcmask 261120
        %v277 = vsel %vm275, %v260, 0
        %v280 = vsel %vm275, %v261, 0
        %v283 = vsel %vm275, %v262, 0
        %v286 = vsel %vm275, %v263, 0
        %288 = vmatprep.subr.mxu0 0.0
        %289 = vmatpush1.msra.mxu0 %v264
        %290 = vmatprep.subr.mxu0 0.0
        %291 = vmatpush1.msra.mxu0 %v265
        %292 = vmatprep.subr.mxu0 0.0
        %293 = vmatpush1.msra.mxu0 %v266
        %294 = vmatprep.subr.mxu0 0.0
        %295 = vmatpush1.msra.mxu0 %v267
        %296 = vmatprep.subr.mxu0 0.0
        %297 = vmatpush1.msra.mxu0 0.0
        %298 = vmatprep.subr.mxu0 0.0
        %299 = vmatpush1.msra.mxu0 0.0
        %300 = vmatprep.subr.mxu0 0.0
        %301 = vmatpush1.msra.mxu0 0.0
        %302 = vmatprep.subr.mxu0 0.0
        %303 = vmatpush1.msra.mxu0 0.0
        %304 = vmatprep.subr.mxu0 0.0
        %305 = vmatpush1.msra.mxu0 0.0
        %306 = vmatprep.subr.mxu0 0.0
        %307 = vmatpush1.msra.mxu0 0.0
        %308 = vmatprep.subr.mxu0 0.0
        %309 = vmatpush1.msra.mxu0 0.0
        %310 = vmatprep.subr.mxu0 0.0
        %311 = vmatpush1.msra.mxu0 0.0
        %312 = vmatprep.subr.mxu0 0.0
        %313 = vmatpush1.msra.mxu0 0.0
        %314 = vmatprep.subr.mxu0 0.0
        %315 = vmatpush1.msra.mxu0 0.0
        %316 = vmatprep.subr.mxu0 0.0
        %317 = vmatpush1.msra.mxu0 0.0
        %318 = vmatprep.subr.mxu0 0.0
        %319 = vmatpush1.msra.mxu0 0.0
        %320 = vmatprep.subr.mxu0 0.0
        %321 = vmatpush1.msra.mxu0 0.0
        %322 = vmatprep.subr.mxu0 0.0
        %323 = vmatpush1.msra.mxu0 0.0
        %324 = vmatprep.subr.mxu0 0.0
        %325 = vmatpush1.msra.mxu0 0.0
        %326 = vmatprep.subr.mxu0 0.0
        %327 = vmatpush1.msra.mxu0 0.0
        %328 = vmatprep.subr.mxu0 0.0
        %329 = vmatpush1.msra.mxu0 0.0
        %330 = vmatprep.subr.mxu0 0.0
        %331 = vmatpush1.msra.mxu0 0.0
        %332 = vmatprep.subr.mxu0 0.0
        %333 = vmatpush1.msra.mxu0 0.0
        %334 = vmatprep.subr.mxu0 0.0
        %335 = vmatpush1.msra.mxu0 0.0
        %336 = vmatprep.subr.mxu0 0.0
        %337 = vmatpush1.msra.mxu0 0.0
        %338 = vmatprep.subr.mxu0 0.0
        %339 = vmatpush1.msra.mxu0 0.0
        %340 = vmatprep.subr.mxu0 0.0
        %341 = vmatpush1.msra.mxu0 0.0
        %342 = vmatprep.subr.mxu0 0.0
        %343 = vmatpush1.msra.mxu0 0.0
        %344 = vmatprep.subr.mxu0 0.0
        %345 = vmatpush1.msra.mxu0 0.0
        %346 = vmatprep.subr.mxu0 0.0
        %347 = vmatpush1.msra.mxu0 0.0
        %348 = vmatprep.subr.mxu0 0.0
        %349 = vmatpush1.msra.mxu0 0.0
        %350 = vmatprep.subr.mxu0 0.0
        %351 = vmatpush1.msra.mxu0 0.0
        %352 = vmatprep.mubr.f32.mxu0 0.0
        %353 = vmatmul.mubr.f32.gmra.mrb[0].mxu0 %v277
        %v354 = vpop.f32.mrb[0].mxu0
        %v355 = vadd.f32 %v273, %v354
        %v356 = vpop.f32.mrb[0].mxu0
        %357 = vmatprep.mubr.f32.mxu0 0.0
        %358 = vmatmul.mubr.f32.gmra.mrb[0].mxu0 %v280
        %v359 = vpop.f32.mrb[0].mxu0
        %v360 = vadd.f32 %v273, %v359
        %v361 = vpop.f32.mrb[0].mxu0
        %362 = vmatprep.mubr.f32.mxu0 0.0
        %363 = vmatmul.mubr.f32.gmra.mrb[0].mxu0 %v283
        %v364 = vpop.f32.mrb[0].mxu0
        %v365 = vadd.f32 %v273, %v364
        %v366 = vpop.f32.mrb[0].mxu0
        %367 = vmatprep.mubr.f32.mxu0 0.0
        %368 = vmatmul.mubr.f32.gmra.mrb[0].mxu0 %v286
        %v369 = vpop.f32.mrb[0].mxu0
        %v370 = vadd.f32 %v273, %v369
        %v371 = vpop.f32.mrb[0].mxu0
        %372 = vdwg.mxu0
        %v373 = vtanh.pop %v355
        %v374 = vtanh.pop %v360
        %v375 = vtanh.pop %v365
        %v376 = vtanh.pop %v370
        %v377 = vld [vmem:[%s3] sm:$0x1]
        %v379 = vlaneseq
        %v380 = vshrl.u32 %v379, 7
        %v381 = vsub.s32 0, %v380
        %v382 = vrot.slane %v377, %v381
        %v384 = vmul.f32 %v373, %v382
        %v385 = vmul.f32 %v374, %v382
        %v386 = vmul.f32 %v375, %v382
        %v387 = vmul.f32 %v376, %v382
        %v388 = vsel %vm275, %v384, 0.0
        %389 = vadd.xlane.f32.xlu0 %v388
        %v390 = vpop.xlane.xlu0 %389
        %v391 = vsel %vm275, %v385, 0.0
        %392 = vadd.xlane.f32.xlu0 %v391
        %v393 = vpop.xlane.xlu0 %392
        %v394 = vsel %vm275, %v386, 0.0
        %395 = vadd.xlane.f32.xlu0 %v394
        %v396 = vpop.xlane.xlu0 %395
        %v397 = vsel %vm275, %v387, 0.0
        %398 = vadd.xlane.f32.xlu0 %v397
        %v399 = vpop.xlane.xlu0 %398
        %s400 = sld [smem:[#allocation2]]
        %v401 = vstv %s400
        %v402 = vadd.f32 %v390, %v401
        %v403 = vadd.f32 %v393, %v401
        %v404 = vadd.f32 %v396, %v401
        %v405 = vadd.f32 %v399, %v401
        %v406 = vrot.slane %v402, 4
        %v407 = vmax.f32 %v402, %v406
        %v408 = vrot.slane %v407, 2
        %v409 = vmax.f32 %v407, %v408
        %v410 = vrot.slane %v409, 1
        %v411 = vmax.f32 %v409, %v410
        %v412 = vrot.slane %v403, 4
        %v413 = vmax.f32 %v403, %v412
        %v414 = vrot.slane %v413, 2
        %v415 = vmax.f32 %v413, %v414
        %v416 = vrot.slane %v415, 1
        %v417 = vmax.f32 %v415, %v416
        %v418 = vrot.slane %v404, 4
        %v419 = vmax.f32 %v404, %v418
        %v420 = vrot.slane %v419, 2
        %v421 = vmax.f32 %v419, %v420
        %v422 = vrot.slane %v421, 1
        %v423 = vmax.f32 %v421, %v422
        %v424 = vrot.slane %v405, 4
        %v425 = vmax.f32 %v405, %v424
        %v426 = vrot.slane %v425, 2
        %v427 = vmax.f32 %v425, %v426
        %v428 = vrot.slane %v427, 1
        %v429 = vmax.f32 %v427, %v428
        %v430 = vsub.f32 %v402, %v411
        %v431 = vsub.f32 %v403, %v417
        %v432 = vsub.f32 %v404, %v423
        %v433 = vsub.f32 %v405, %v429
        %v434 = vmul.f32 %v430, 1.442695
        %v435 = vpow.pop %v434
        %v436 = vmul.f32 %v431, 1.442695
        %v437 = vpow.pop %v436
        %v438 = vmul.f32 %v432, 1.442695
        %v439 = vpow.pop %v438
        %v440 = vmul.f32 %v433, 1.442695
        %v441 = vpow.pop %v440
        %v442 = vrot.slane %v435, 4
        %v443 = vadd.f32 %v435, %v442
        %v444 = vrot.slane %v443, 2
        %v445 = vadd.f32 %v443, %v444
        %v446 = vrot.slane %v445, 1
        %v447 = vadd.f32 %v445, %v446
        %v448 = vrot.slane %v437, 4
        %v449 = vadd.f32 %v437, %v448
        %v450 = vrot.slane %v449, 2
        %v451 = vadd.f32 %v449, %v450
        %v452 = vrot.slane %v451, 1
        %v453 = vadd.f32 %v451, %v452
        %v454 = vrot.slane %v439, 4
        %v455 = vadd.f32 %v439, %v454
        %v456 = vrot.slane %v455, 2
        %v457 = vadd.f32 %v455, %v456
        %v458 = vrot.slane %v457, 1
        %v459 = vadd.f32 %v457, %v458
        %v460 = vrot.slane %v441, 4
        %v461 = vadd.f32 %v441, %v460
        %v462 = vrot.slane %v461, 2
        %v463 = vadd.f32 %v461, %v462
        %v464 = vrot.slane %v463, 1
        %v465 = vadd.f32 %v463, %v464
        %v466 = vrcp.pop %v447
        %v467 = vrcp.pop %v453
        %v468 = vrcp.pop %v459
        %v469 = vrcp.pop %v465
        %v470 = vmul.f32 %v435, %v466
        %v471 = vmul.f32 %v437, %v467
        %v472 = vmul.f32 %v439, %v468
        %v473 = vmul.f32 %v441, %v469
        %v474 = vmul.f32 %v260, %v470
        %v475 = vmul.f32 %v261, %v471
        %v476 = vmul.f32 %v262, %v472
        %v477 = vmul.f32 %v263, %v473
        %v478 = vsel %vm275, %v474, 0.0
        %v479 = vrot.slane %v478, 4
        %v480 = vadd.f32 %v478, %v479
        %v481 = vrot.slane %v480, 2
        %v482 = vadd.f32 %v480, %v481
        %v483 = vrot.slane %v482, 1
        %v484 = vadd.f32 %v482, %v483
        %v485 = vsel %vm275, %v475, 0.0
        %v486 = vrot.slane %v485, 4
        %v487 = vadd.f32 %v485, %v486
        %v488 = vrot.slane %v487, 2
        %v489 = vadd.f32 %v487, %v488
        %v490 = vrot.slane %v489, 1
        %v491 = vadd.f32 %v489, %v490
        %v492 = vsel %vm275, %v476, 0.0
        %v493 = vrot.slane %v492, 4
        %v494 = vadd.f32 %v492, %v493
        %v495 = vrot.slane %v494, 2
        %v496 = vadd.f32 %v494, %v495
        %v497 = vrot.slane %v496, 1
        %v498 = vadd.f32 %v496, %v497
        %v499 = vsel %vm275, %v477, 0.0
        %v500 = vrot.slane %v499, 4
        %v501 = vadd.f32 %v499, %v500
        %v502 = vrot.slane %v501, 2
        %v503 = vadd.f32 %v501, %v502
        %v504 = vrot.slane %v503, 1
        %v505 = vadd.f32 %v503, %v504
        %vm510 = vcmask 1041409
        %v511 = vsel %vm510, %v491, %v484
        %vm512 = vcmask 1042434
        %v513 = vsel %vm512, %v498, %v511
        %vm514 = vcmask 1043459
        %v515 = vsel %vm514, %v505, %v513
        %vm517 = vcmask 257024
        %518 = vst.msk [vmem:[%s258] sm:$0xf] %vm517, %v515
        %s519 = sand.u32 %s142, 1
        %s520 = scalar_lea.sflag [#allocation5], %s519
        %s521 = sand.u32 %s142, 1
        %s522 = smul.addr %s521, 4
        %s523 = scalar_lea.vmem [#allocation8], %s522
        // Predicated region
        $region49: #{tpu_custom_call.1} parent=39 // pred_check
          %p524 = pneg %p152
        $region50: #{tpu_custom_call.1} parent=39 // pred_check_branch
          %526 = sbr.rel (%p524) target = $region52
        $region51: #{tpu_custom_call.1} parent=39 // pred_region
          %s528 = ssub.s32 64, 64
          %529 = vsyncadd %s520, %s528
          %s530 = smul.addr %s24, 64
          %s531 = scalar_lea.hbm %s5, %s530
          %s533 = sshll.u32 %s523, 4
          %s534 = int_to_ptr.vmem [resolvable:$true] %s533
          %536 = dma.vmem_to_hbm [thread:$0]  %s534, 64, %s531, %s520
        $region52: #{tpu_custom_call.1} parent=39 // pred_fallthru
          _
      $region40: #{tpu_custom_call.1} parent=5 // pred_fallthru
        _
      %p537 = scmp.le.s32.totalorder 2, %s19
      // Predicated region
      $region53: #{tpu_custom_call.1} parent=5 // pred_check
        %p538 = pneg %p537
      $region54: #{tpu_custom_call.1} parent=5 // pred_check_branch
        %540 = sbr.rel (%p538) target = $region56
      $region55: #{tpu_custom_call.1} parent=5 // pred_region
        %s541 = ssub.s32 %s19, 2
        // Predicated region
        $region57: #{tpu_custom_call.1} parent=55 // pred_check
          %p542 = pneg %p158
        $region58: #{tpu_custom_call.1} parent=55 // pred_check_branch
          %544 = sbr.rel (%p542) target = $region60
        $region59: #{tpu_custom_call.1} parent=55 // pred_region
          %s545 = sand.u32 %s143, 1
          %s546 = scalar_lea.sflag [#allocation5], %s545
          %s547 = sand.u32 %s143, 1
          %s548 = smul.addr %s547, 4
          %s549 = scalar_lea.vmem [#allocation8], %s548
          %550 = dma.done %s546, 64
        $region60: #{tpu_custom_call.1} parent=55 // pred_fallthru
          _
      $region56: #{tpu_custom_call.1} parent=5 // pred_fallthru
        _
    $region6: #{tpu_custom_call.1} parent=1 // loop_footer
      %s23 = sadd.s32 1, %s19
    $region7: #{tpu_custom_call.1} parent=1 // loop_footer_branch
      %18 = sbr.rel target = $region3
    $region8: #{tpu_custom_call.1} parent=1 // loop_exit
      _
    %551 = vsyncpa [#allocation4], 1
    %s552 = scalar_lea.sflag [#allocation4], 1
    %553 = vsyncpa %s552, 1
    %554 = vsyncpa [#allocation7], 1
    %555 = vsyncpa [#allocation5], 1
    %s556 = scalar_lea.sflag [#allocation5], 1
    %557 = vsyncpa %s556, 1

</llo_original>
